<compile_context>
chip_gen: v6e
topology: v6e:2x2x1
jax: 0.10.0
libtpu: 0.0.40
codegen_flags: <defaults>
</compile_context>

<pallas_src>
import functools

import jax
import jax.numpy as jnp
from jax.experimental import pallas as pl
from jax.experimental.pallas import tpu as pltpu

EPS = 1e-7


def _round_up(x, m):
    return ((x + m - 1) // m) * m


def _ea_row_loss_kernel(x_ref, ab_ref, out_ref, m_sc, l_sc, *, s, n_classes, mask_cols):
    # x_ref:   (TB, TC) tile of raw cosine similarities (input dtype, upcast here)
    # ab_ref:  (TB, 2) f32  [a, b] = [s*margined_target_logit, s*unmargined_target_logit]
    #          (both 0 for rows with label == -1 -> correction is exactly 0)
    # out_ref: (TB, 1) f32  per-row NLL, written on the last class tile
    # m_sc/l_sc: (TB, 1) f32 running max / running rescaled exp-sum
    k = pl.program_id(1)
    nk = pl.num_programs(1)
    tb, tc = x_ref.shape

    @pl.when(k == 0)
    def _init():
        m_sc[...] = jnp.full_like(m_sc, -jnp.inf)
        l_sc[...] = jnp.zeros_like(l_sc)

    # Hot path: one mul per element; no clip / select / target handling here.
    logits = s * x_ref[...].astype(jnp.float32)                       # (TB, TC)

    if mask_cols:
        # Only the last class tile has padded lanes; gate the mask there.
        def _mask_pad(lg):
            col = jax.lax.broadcasted_iota(jnp.int32, (tb, tc), 1)
            return jnp.where(col < (n_classes - k * tc), lg, -jnp.inf)

        logits = jax.lax.cond(k == nk - 1, _mask_pad, lambda lg: lg, logits)

    # Online log-sum-exp over class tiles.
    tile_max = jnp.max(logits, axis=-1, keepdims=True)                # (TB, 1)
    m_prev = m_sc[...]
    m_new = jnp.maximum(m_prev, tile_max)
    l_sc[...] = (l_sc[...] * jnp.exp(m_prev - m_new)
                 + jnp.sum(jnp.exp(logits - m_new), axis=-1, keepdims=True))
    m_sc[...] = m_new

    @pl.when(k == nk - 1)
    def _finalize():
        ab = ab_ref[...].astype(jnp.float32)                          # (TB, 2)
        a = ab[:, 0:1]            # margined target logit
        b = ab[:, 1:2]            # unmargined target logit (exactly as streamed)
        m = m_sc[...]
        exp_a = jnp.exp(a - m)
        # Swap the target's unmargined exp term for the margined one; clamp to
        # the exact lower bound exp(a - m) so float cancellation can't push the
        # sum non-positive for heavily-dominated rows.
        l = jnp.maximum(l_sc[...] + (exp_a - jnp.exp(b - m)), exp_a)
        out_ref[...] = m + jnp.log(l) - a                             # per-row NLL


def elastic_arcface_loss(cos_theta, label, key, *, s=30.0, m=0.5, std=0.0125,
                         block_b=256, block_c=4096):
    """cos_theta: (B, C) f32 or bf16 cosine similarities; label: (B,) int; key: PRNG key.

    Returns (mean_loss, margin) where margin is the per-row gaussian margin used,
    so a reference implementation can reproduce the exact same forward.
    """
    B, C = cos_theta.shape
    label = label.astype(jnp.int32)
    valid = label >= 0

    # Per-row gaussian margin, like torch.normal(mean=m, std=std, size=(B, 1)).
    margin = m + std * jax.random.normal(key, (B, 1), dtype=jnp.float32)

    # O(B) side computation: gather the one target cosine per row and build the
    # margined target logit with cos(acos(t) + m) = t*cos(m) - sqrt(1-t^2)*sin(m).
    lbl_safe = jnp.where(valid, label, 0)
    tgt = jnp.take_along_axis(cos_theta, lbl_safe[:, None], axis=1).astype(jnp.float32)
    tgt_c = jnp.clip(tgt, -1.0 + EPS, 1.0 - EPS)
    margined = (tgt_c * jnp.cos(margin)
                - jnp.sqrt(jnp.maximum(1.0 - tgt_c * tgt_c, 0.0)) * jnp.sin(margin))
    valid_f = valid[:, None].astype(jnp.float32)
    a = s * margined * valid_f            # margined target logit   (0 for ignored rows)
    b = s * tgt * valid_f                 # unmargined target logit (0 for ignored rows)
    ab = jnp.concatenate([a, b], axis=1).astype(jnp.float32)          # (B, 2), tiny DMA

    # Tiling: sublane/lane aligned; keep >= 2 batch tiles when B allows so both
    # v7x TensorCores get work on the "parallel" axis; partial blocks are fine
    # (no full-slab pad/astype of the (B, C) input).
    tb = _round_up(min(block_b, _round_up(max((B + 1) // 2, 1), 8)), 8)
    tc = _round_up(min(block_c, _round_up(C, 128)), 128)
    grid = (pl.cdiv(B, tb), pl.cdiv(C, tc))
    mask_cols = (C % tc) != 0

    x_block_bytes = tb * tc * cos_theta.dtype.itemsize
    vmem_limit = int(min(48 * 1024 * 1024, 2 * x_block_bytes + 8 * 1024 * 1024))

    kernel = functools.partial(_ea_row_loss_kernel, s=float(s),
                               n_classes=C, mask_cols=mask_cols)

    per_row = pl.pallas_call(
        kernel,
        out_shape=jax.ShapeDtypeStruct((B, 1), jnp.float32),
        grid_spec=pltpu.PrefetchScalarGridSpec(
            num_scalar_prefetch=0,
            grid=grid,
            in_specs=[
                pl.BlockSpec((tb, tc), lambda i, k: (i, k)),   # streamed cosine tiles
                pl.BlockSpec((tb, 2), lambda i, k: (i, 0)),    # per-row [a, b]
            ],
            out_specs=pl.BlockSpec((tb, 1), lambda i, k: (i, 0)),
            scratch_shapes=[
                pltpu.VMEM((tb, 1), jnp.float32),   # running max
                pltpu.VMEM((tb, 1), jnp.float32),   # running exp-sum
            ],
        ),
        compiler_params=pltpu.CompilerParams(
            dimension_semantics=("parallel", "arbitrary"),
            vmem_limit_bytes=vmem_limit,
        ),
        cost_estimate=pl.CostEstimate(
            flops=4 * B * C,
            transcendentals=B * C,
            bytes_accessed=B * C * cos_theta.dtype.itemsize + 12 * B,
        ),
    )(cos_theta, ab)

    # Rows with label == -1 contribute 0; the mean still divides by B.
    per_row = jnp.where(valid[:, None], per_row, 0.0)
    loss = jnp.sum(per_row) / B
    return loss, margin


def _reference_loss(cos_theta, label, margin, s=30.0):
    """Pure-JAX reference mirroring the PyTorch forward (clamp/acos/scatter/cos/CE)."""
    x = jnp.clip(cos_theta.astype(jnp.float32), -1.0 + EPS, 1.0 - EPS)
    _, C = x.shape
    theta = jnp.arccos(x)
    valid = (label >= 0)[:, None].astype(jnp.float32)
    one_hot = jax.nn.one_hot(jnp.where(label >= 0, label, 0), C, dtype=jnp.float32) * valid
    theta = theta + one_hot * margin
    logits = jnp.cos(theta) * s
    logp = jax.nn.log_softmax(logits, axis=-1)
    nll = -jnp.sum(logp * one_hot, axis=-1)    # 0 for rows with label == -1
    return jnp.mean(nll)


if __name__ == "__main__":
    key = jax.random.PRNGKey(0)

    # Small shapes; small block sizes so the 2-D grid, online-LSE, partial-block
    # and padded-column paths are all exercised.  Case 2 has non-multiple B and C
    # plus an ignored (-1) label; case 3 streams bf16 with default tiles.
    cases = [
        (16, 1024, jnp.float32, False, 8, 256),
        (12, 1000, jnp.float32, True, 8, 256),
        (16, 512, jnp.bfloat16, False, 256, 4096),
    ]
    for (B, C, dtype, use_ignore, bb, bc) in cases:
        key, k_x, k_lbl, k_m = jax.random.split(key, 4)

        # "input" to the loss is already a cosine-similarity matrix in [-1, 1]
        cos_theta = jnp.tanh(jax.random.normal(k_x, (B, C), dtype=jnp.float32)).astype(dtype)
        label = jax.random.randint(k_lbl, (B,), 0, C, dtype=jnp.int32)
        if use_ignore:
            label = label.at[0].set(-1)   # exercise the "no margin / no contribution" path

        loss, margin = elastic_arcface_loss(cos_theta, label, k_m, block_b=bb, block_c=bc)
        loss = jax.block_until_ready(loss)

        ref = _reference_loss(cos_theta, label, margin)
        assert jnp.allclose(loss, ref, atol=1e-3, rtol=1e-3), \
            (B, C, str(dtype), float(loss), float(ref))

    print("KERNEL_OK")
</pallas_src>

<mosaic_0001>
module attributes {stable_mosaic.version = 11 : i64} {
  func.func @_ea_row_loss_kernel(%arg0: i32, %arg1: i32, %arg2: memref<8x256xf32, #tpu.memory_space<vmem>>, %arg3: memref<8x2xf32, #tpu.memory_space<vmem>>, %arg4: memref<8x1xf32, #tpu.memory_space<vmem>>, %arg5: memref<8x1xf32, #tpu.memory_space<vmem>>, %arg6: memref<8x1xf32, #tpu.memory_space<vmem>>) attributes {dimension_semantics = [#tpu.dimension_semantics<parallel>, #tpu.dimension_semantics<arbitrary>], iteration_bounds = array<i64: 2, 4>, scalar_prefetch = 0 : i64, scratch_operands = 2 : i64, tpu.core_type = #tpu.core_type<tc>, window_params = [{transform_indices = @transform_0, window_bounds = array<i64: 8, 256>}, {transform_indices = @transform_1, window_bounds = array<i64: 8, 2>}, {transform_indices = @transform_2, window_bounds = array<i64: 8, 1>}]} {
    %c0_i32 = arith.constant 0 : i32
    %0 = arith.cmpi eq, %arg1, %c0_i32 : i32
    %1 = arith.extui %0 : i1 to i32
    %c0_i32_0 = arith.constant 0 : i32
    %2 = arith.cmpi ne, %1, %c0_i32_0 : i32
    scf.if %2 {
      %cst_13 = arith.constant 0xFF800000 : f32
      %25 = vector.broadcast %cst_13 : f32 to vector<8x1xf32>
      %c0_14 = arith.constant 0 : index
      %c0_15 = arith.constant 0 : index
      %26 = vector.load %arg5[%c0_14, %c0_15] : memref<8x1xf32, #tpu.memory_space<vmem>>, vector<8x1xf32>
      tpu.vector_store %arg5[%c0_14, %c0_15], %25 {strides = array<i32>} : memref<8x1xf32, #tpu.memory_space<vmem>>, vector<8x1xf32>,
      %cst_16 = arith.constant 0.000000e+00 : f32
      %27 = vector.broadcast %cst_16 : f32 to vector<8x1xf32>
      %c0_17 = arith.constant 0 : index
      %c0_18 = arith.constant 0 : index
      %28 = vector.load %arg6[%c0_17, %c0_18] : memref<8x1xf32, #tpu.memory_space<vmem>>, vector<8x1xf32>
      tpu.vector_store %arg6[%c0_17, %c0_18], %27 {strides = array<i32>} : memref<8x1xf32, #tpu.memory_space<vmem>>, vector<8x1xf32>,
    } else {
    }
    %c0 = arith.constant 0 : index
    %c0_1 = arith.constant 0 : index
    %3 = vector.load %arg2[%c0, %c0_1] : memref<8x256xf32, #tpu.memory_space<vmem>>, vector<8x256xf32>
    %cst = arith.constant 3.000000e+01 : f32
    %4 = vector.broadcast %cst : f32 to vector<8x256xf32>
    %5 = arith.mulf %4, %3 : vector<8x256xf32>
    %cst_2 = arith.constant dense<0xFF800000> : vector<8xf32>
    %6 = vector.multi_reduction <maximumf>, %5, %cst_2 [1] : vector<8x256xf32> to vector<8xf32>
    %7 = vector.shape_cast %6 : vector<8xf32> to vector<8x1xf32>
    %c0_3 = arith.constant 0 : index
    %c0_4 = arith.constant 0 : index
    %8 = vector.load %arg5[%c0_3, %c0_4] : memref<8x1xf32, #tpu.memory_space<vmem>>, vector<8x1xf32>
    %9 = arith.maximumf %8, %7 : vector<8x1xf32>
    %c0_5 = arith.constant 0 : index
    %c0_6 = arith.constant 0 : index
    %10 = vector.load %arg6[%c0_5, %c0_6] : memref<8x1xf32, #tpu.memory_space<vmem>>, vector<8x1xf32>
    %11 = arith.subf %8, %9 : vector<8x1xf32>
    %12 = math.exp %11 : vector<8x1xf32>
    %13 = arith.mulf %10, %12 : vector<8x1xf32>
    %14 = vector.broadcast %9 : vector<8x1xf32> to vector<8x256xf32>
    %15 = arith.subf %5, %14 : vector<8x256xf32>
    %16 = math.exp %15 : vector<8x256xf32>
    %cst_7 = arith.constant dense<0.000000e+00> : vector<8xf32>
    %17 = vector.multi_reduction <add>, %16, %cst_7 [1] : vector<8x256xf32> to vector<8xf32>
    %18 = vector.shape_cast %17 : vector<8xf32> to vector<8x1xf32>
    %19 = arith.addf %13, %18 : vector<8x1xf32>
    %c0_8 = arith.constant 0 : index
    %c0_9 = arith.constant 0 : index
    %20 = vector.load %arg6[%c0_8, %c0_9] : memref<8x1xf32, #tpu.memory_space<vmem>>, vector<8x1xf32>
    tpu.vector_store %arg6[%c0_8, %c0_9], %19 {strides = array<i32>} : memref<8x1xf32, #tpu.memory_space<vmem>>, vector<8x1xf32>,
    %c0_10 = arith.constant 0 : index
    %c0_11 = arith.constant 0 : index
    %21 = vector.load %arg5[%c0_10, %c0_11] : memref<8x1xf32, #tpu.memory_space<vmem>>, vector<8x1xf32>
    tpu.vector_store %arg5[%c0_10, %c0_11], %9 {strides = array<i32>} : memref<8x1xf32, #tpu.memory_space<vmem>>, vector<8x1xf32>,
    %c3_i32 = arith.constant 3 : i32
    %22 = arith.cmpi eq, %arg1, %c3_i32 : i32
    %23 = arith.extui %22 : i1 to i32
    %c0_i32_12 = arith.constant 0 : i32
    %24 = arith.cmpi ne, %23, %c0_i32_12 : i32
    scf.if %24 {
      %c0_13 = arith.constant 0 : index
      %c0_14 = arith.constant 0 : index
      %25 = vector.load %arg3[%c0_13, %c0_14] : memref<8x2xf32, #tpu.memory_space<vmem>>, vector<8x2xf32>
      %26 = vector.extract_strided_slice %25 {offsets = [0, 0], sizes = [8, 1], strides = [1, 1]} : vector<8x2xf32> to vector<8x1xf32>
      %27 = vector.extract_strided_slice %25 {offsets = [0, 1], sizes = [8, 1], strides = [1, 1]} : vector<8x2xf32> to vector<8x1xf32>
      %c0_15 = arith.constant 0 : index
      %c0_16 = arith.constant 0 : index
      %28 = vector.load %arg5[%c0_15, %c0_16] : memref<8x1xf32, #tpu.memory_space<vmem>>, vector<8x1xf32>
      %29 = arith.subf %26, %28 : vector<8x1xf32>
      %30 = math.exp %29 : vector<8x1xf32>
      %c0_17 = arith.constant 0 : index
      %c0_18 = arith.constant 0 : index
      %31 = vector.load %arg6[%c0_17, %c0_18] : memref<8x1xf32, #tpu.memory_space<vmem>>, vector<8x1xf32>
      %32 = arith.subf %27, %28 : vector<8x1xf32>
      %33 = math.exp %32 : vector<8x1xf32>
      %34 = arith.subf %30, %33 : vector<8x1xf32>
      %35 = arith.addf %31, %34 : vector<8x1xf32>
      %36 = arith.maximumf %35, %30 : vector<8x1xf32>
      %37 = math.log %36 : vector<8x1xf32>
      %38 = arith.addf %28, %37 : vector<8x1xf32>
      %39 = arith.subf %38, %26 : vector<8x1xf32>
      %c0_19 = arith.constant 0 : index
      %c0_20 = arith.constant 0 : index
      %40 = vector.load %arg4[%c0_19, %c0_20] : memref<8x1xf32, #tpu.memory_space<vmem>>, vector<8x1xf32>
      tpu.vector_store %arg4[%c0_19, %c0_20], %39 {strides = array<i32>} : memref<8x1xf32, #tpu.memory_space<vmem>>, vector<8x1xf32>,
    } else {
    }
    return
  }
  func.func @transform_0(%arg0: i32, %arg1: i32) -> (i32, i32) {
    %c0_i32 = arith.constant 0 : i32
    return %arg0, %arg1 : i32, i32
  }
  func.func @transform_1(%arg0: i32, %arg1: i32) -> (i32, i32) {
    %c0_i32 = arith.constant 0 : i32
    %c0_i32_0 = arith.constant 0 : i32
    return %arg0, %c0_i32 : i32, i32
  }
  func.func @transform_2(%arg0: i32, %arg1: i32) -> (i32, i32) {
    %c0_i32 = arith.constant 0 : i32
    %c0_i32_0 = arith.constant 0 : i32
    return %arg0, %c0_i32 : i32, i32
  }
}

</mosaic_0001>

<llo_original>
// kernel: tpu_custom_call.1
$region0: #{tpu_custom_call.1}
  #allocation0 [shape = 'u32[]', space=smem, size = 0x4, offset = 0x4, fixed_abs, tag = 'smem constant byte address 0x4 - core index']
  #allocation1 [shape = 'u32[144,128]{1,0:T(1,128)}', space=vmem, size = 0x12000, scoped, tag = 'internal scratch']
  #allocation2 [shape = 'f32[8,1]{1,0:T(8,128)}', space=vmem, size = 0x1000, scoped, tag = 'scratch operand']
  #allocation3 [shape = 'f32[8,1]{1,0:T(8,128)}', space=vmem, size = 0x1000, scoped, tag = 'scratch operand']
  %s0 = inlined_call_operand.hbm [shape: f32[16,1024], index: 0, kind: input, shape index: {}]
  %s1 = inlined_call_operand.vmem [shape: f32[16,2], index: 1, kind: input, shape index: {}]
  %s2 = inlined_call_operand.vmem [shape: f32[16,1], index: 2, kind: output, shape index: {}]
  %s3 = sld [smem:[#allocation0]]
  $region53: #{tpu_custom_call.1} parent=0
    _
  %s5 = ssub.s32 1, %s3
  %s6 = scalar_select 0, %s5, %s3
  $region1: #{tpu_custom_call.1} parent=0
    #allocation4 [shape = 'u8[16384]{0}', space=vmem, size = 0x4000, scoped, tag = 'input window, operand 0']
    #allocation5 [shape = 's32[2]{0}', space=sflag, size = 0x8, scoped, tag = 'scoped memory for tpu_custom_call.1']
    %7 = vsyncpa [#allocation5], 0
    %s8 = scalar_lea.sflag [#allocation5], 1
    %9 = vsyncpa %s8, 0
    loop: start=0, step=1, limit=10
    $region2: #{tpu_custom_call.1} parent=1 // loop_pre_header
      _
    $region3: #{tpu_custom_call.1} parent=1 // loop_header
      %s11 = sphi 0, %s15
      %p12 = scmp.ge.s32.totalorder %s11, 10
      %s18 = sphi 0, %s30
      %s19 = sphi 0, %s26
      %s20 = sphi 0, %s18
      %s21 = sphi 0, %s19
      %s22 = sphi 0, %s20
      %s23 = sphi 0, %s21
      %s35 = sphi 0, %s37
      %s38 = sphi 0, %s35
      %s39 = sphi 0, %s38
      %s55 = sphi 0, %s39
      %s61 = sphi 0, %s63
      %s64 = sphi 0, %s61
      %s65 = sphi 0, %s64
      %s81 = sphi 0, %s65
      %s87 = sphi 0, %s89
      %s90 = sphi 0, %s87
      %s91 = sphi 0, %s90
      %s107 = sphi 0, %s91
    $region4: #{tpu_custom_call.1} parent=1 // loop_header_branch
      %14 = sbr.rel (%p12) target = $region8
    $region5: #{tpu_custom_call.1} parent=1 // loop_body
      %s16 = ssub.s32 %s11, 1
      %s17 = ssub.s32 %s11, 2
      %s24 = sadd.s32 1, %s19
      %p25 = scmp.ge.s32.totalorder %s24, 4
      %s26 = scalar_select %p25, 0, %s24
      %s27 = sadd.s32 1, %s18
      %s28 = scalar_select %p25, %s27, %s18
      %p29 = scmp.ge.s32.totalorder %s28, 2
      %s30 = scalar_select %p29, 0, %s28
      %s31 = ssub.s32 %s18, %s30
      %s32 = ssub.s32 %s19, %s26
      %s33 = sor.u32 %s31, %s32
      %p34 = scmp.eq.s32.totalorder %s33, 0
      %s36 = sadd.s32 %s35, 1
      %s37 = scalar_select %p34, %s35, %s36
      %p40 = pneg %p34
      %p41 = scmp.eq.s32.totalorder %s11, 7
      %p42 = por %p40, %p41
      %p43 = scmp.ne.s32.totalorder %s35, %s38
      %p44 = scmp.eq.s32.totalorder %s11, 0
      %p45 = por %p43, %p44
      %p46 = scmp.ne.s32.totalorder %s35, %s38
      %p47 = scmp.eq.s32.totalorder %s16, 7
      %p48 = por %p46, %p47
      %p49 = scmp.ne.s32.totalorder %s38, %s39
      %p50 = scmp.eq.s32.totalorder %s16, 0
      %p51 = por %p49, %p50
      %p52 = scmp.ne.s32.totalorder %s38, %s39
      %p53 = scmp.eq.s32.totalorder %s17, 7
      %p54 = por %p52, %p53
      %p56 = scmp.ne.s32.totalorder %s39, %s55
      %p57 = scmp.eq.s32.totalorder %s17, 0
      %p58 = por %p56, %p57
      %s59 = ssub.s32 %s18, %s30
      %p60 = scmp.eq.s32.totalorder %s59, 0
      %s62 = sadd.s32 %s61, 1
      %s63 = scalar_select %p60, %s61, %s62
      %p66 = pneg %p60
      %p67 = scmp.eq.s32.totalorder %s11, 7
      %p68 = por %p66, %p67
      %p69 = scmp.ne.s32.totalorder %s61, %s64
      %p70 = scmp.eq.s32.totalorder %s11, 0
      %p71 = por %p69, %p70
      %p72 = scmp.ne.s32.totalorder %s61, %s64
      %p73 = scmp.eq.s32.totalorder %s16, 7
      %p74 = por %p72, %p73
      %p75 = scmp.ne.s32.totalorder %s64, %s65
      %p76 = scmp.eq.s32.totalorder %s16, 0
      %p77 = por %p75, %p76
      %p78 = scmp.ne.s32.totalorder %s64, %s65
      %p79 = scmp.eq.s32.totalorder %s17, 7
      %p80 = por %p78, %p79
      %p82 = scmp.ne.s32.totalorder %s65, %s81
      %p83 = scmp.eq.s32.totalorder %s17, 0
      %p84 = por %p82, %p83
      %s85 = ssub.s32 %s18, %s30
      %p86 = scmp.eq.s32.totalorder %s85, 0
      %s88 = sadd.s32 %s87, 1
      %s89 = scalar_select %p86, %s87, %s88
      %p92 = pneg %p86
      %p93 = scmp.eq.s32.totalorder %s11, 7
      %p94 = por %p92, %p93
      %p95 = scmp.ne.s32.totalorder %s87, %s90
      %p96 = scmp.eq.s32.totalorder %s11, 0
      %p97 = por %p95, %p96
      %p98 = scmp.ne.s32.totalorder %s87, %s90
      %p99 = scmp.eq.s32.totalorder %s16, 7
      %p100 = por %p98, %p99
      %p101 = scmp.ne.s32.totalorder %s90, %s91
      %p102 = scmp.eq.s32.totalorder %s16, 0
      %p103 = por %p101, %p102
      %p104 = scmp.ne.s32.totalorder %s90, %s91
      %p105 = scmp.eq.s32.totalorder %s17, 7
      %p106 = por %p104, %p105
      %p108 = scmp.ne.s32.totalorder %s91, %s107
      %p109 = scmp.eq.s32.totalorder %s17, 0
      %p110 = por %p108, %p109
      %p111 = scmp.le.s32.totalorder 1, %s11
      %p112 = scmp.lt.s32.totalorder %s11, 9
      %p113 = pnand %p111, %p112
      %p114 = pneg %p113
      // Predicated region
      $region9: #{tpu_custom_call.1} parent=5 // pred_check
        _
      $region10: #{tpu_custom_call.1} parent=5 // pred_check_branch
        %116 = sbr.rel (%p113) target = $region12
      $region11: #{tpu_custom_call.1} parent=5 // pred_region
        %s117 = ssub.s32 %s11, 1
      $region12: #{tpu_custom_call.1} parent=5 // pred_fallthru
        _
      %p118 = scmp.lt.s32.totalorder %s11, 8
      // Predicated region
      $region13: #{tpu_custom_call.1} parent=5 // pred_check
        %p119 = pneg %p118
      $region14: #{tpu_custom_call.1} parent=5 // pred_check_branch
        %121 = sbr.rel (%p119) target = $region16
      $region15: #{tpu_custom_call.1} parent=5 // pred_region
        // Predicated region
        $region17: #{tpu_custom_call.1} parent=15 // pred_check
          %p122 = pneg %p45
        $region18: #{tpu_custom_call.1} parent=15 // pred_check_branch
          %124 = sbr.rel (%p122) target = $region20
        $region19: #{tpu_custom_call.1} parent=15 // pred_region
          %s125 = sand.u32 %s35, 1
          %s126 = scalar_lea.sflag [#allocation5], %s125
          %s127 = sand.u32 %s35, 1
          %s128 = smul.addr %s127, 16
          %s129 = scalar_lea.vmem [#allocation4], %s128
          %s130 = smul.u32 2, %s19
          %s132 = ssub.s32 256, 256
          %133 = vsyncadd %s126, %s132
          %s134 = smul.addr %s18, 8
          %s135 = sadd.s32 %s130, %s134
          %s136 = smul.addr %s135, 128
          %s137 = scalar_lea.hbm %s0, %s136
          %s139 = sshll.u32 %s129, 4
          %s140 = int_to_ptr.vmem [resolvable:$true] %s139
          %142 = dma.hbm_to_vmem [thread:$0]  %s137, 256, %s140, %s126
        $region20: #{tpu_custom_call.1} parent=15 // pred_fallthru
          _
        // Predicated region
        $region21: #{tpu_custom_call.1} parent=15 // pred_check
          %p143 = pneg %p71
        $region22: #{tpu_custom_call.1} parent=15 // pred_check_branch
          %145 = sbr.rel (%p143) target = $region24
        $region23: #{tpu_custom_call.1} parent=15 // pred_region
          %p146 = scmp.lt.s32.totalorder %s18, 1
          %s147 = scalar_select %p146, %s18, 1
          %s148 = smul.addr %s147, 8
          %s149 = scalar_lea.vmem %s1, %s148
        $region24: #{tpu_custom_call.1} parent=15 // pred_fallthru
          _
      $region16: #{tpu_custom_call.1} parent=5 // pred_fallthru
        _
      %p150 = scmp.le.s32.totalorder 1, %s11
      %p151 = scmp.lt.s32.totalorder %s11, 9
      %p152 = pnand %p150, %p151
      %p153 = pneg %p152
      // Predicated region
      $region25: #{tpu_custom_call.1} parent=5 // pred_check
        _
      $region26: #{tpu_custom_call.1} parent=5 // pred_check_branch
        %155 = sbr.rel (%p152) target = $region28
      $region27: #{tpu_custom_call.1} parent=5 // pred_region
        %s156 = ssub.s32 %s11, 1
        %s157 = sand.u32 %s38, 1
        %s158 = scalar_lea.sflag [#allocation5], %s157
        %s159 = sand.u32 %s38, 1
        %s160 = smul.addr %s159, 16
        %s161 = scalar_lea.vmem [#allocation4], %s160
        // Predicated region
        $region29: #{tpu_custom_call.1} parent=27 // pred_check
          %p162 = pneg %p51
        $region30: #{tpu_custom_call.1} parent=27 // pred_check_branch
          %164 = sbr.rel (%p162) target = $region32
        $region31: #{tpu_custom_call.1} parent=27 // pred_region
          %165 = dma.done %s158, 256
        $region32: #{tpu_custom_call.1} parent=27 // pred_fallthru
          _
        %s166 = sand.u32 %s38, 1
        %s167 = scalar_lea.sflag [#allocation5], %s166
        %s168 = sand.u32 %s38, 1
        %s169 = smul.addr %s168, 16
        %s170 = scalar_lea.vmem [#allocation4], %s169
        %p171 = pneg %p51
        %p172 = pneg %p48
        %p173 = scmp.lt.s32.totalorder %s20, 1
        %s174 = scalar_select %p173, %s20, 1
        %s175 = smul.addr %s174, 8
        %s176 = scalar_lea.vmem %s1, %s175
        %p177 = pneg %p77
        %p178 = pneg %p74
        %p179 = pneg %p103
        %p180 = pneg %p100
        %p181 = scmp.lt.s32.totalorder %s20, 1
        %s182 = scalar_select %p181, %s20, 1
        %s183 = smul.addr %s182, 8
        %s184 = scalar_lea.vmem %s2, %s183
        %s185 = smul.u32 2, %s21
        %p186 = scmp.lt.s32.totalorder %s20, 1
        %s187 = scalar_select %p186, %s20, 1
        %s188 = smul.addr %s187, 8
        %s189 = scalar_lea.vmem %s1, %s188
        %p190 = scmp.lt.s32.totalorder %s20, 1
        %s191 = scalar_select %p190, %s20, 1
        %s192 = smul.addr %s191, 8
        %s193 = scalar_lea.vmem %s2, %s192
        %p194 = scmp.eq.s32.totalorder %s21, 0
        // Predicated region
        $region33: #{tpu_custom_call.1} parent=27 // pred_check
          %p195 = pneg %p194
        $region34: #{tpu_custom_call.1} parent=27 // pred_check_branch
          %197 = sbr.rel (%p195) target = $region36
        $region35: #{tpu_custom_call.1} parent=27 // pred_region
          %vm198 = vcmask 7168
          %199 = vst.msk [vmem:[#allocation2] sm:$0xff] %vm198, -inf
          %200 = vst.msk [vmem:[#allocation3] sm:$0xff] %vm198, 0.0
        $region36: #{tpu_custom_call.1} parent=27 // pred_fallthru
          _
        %v201 = vld [vmem:[%s161] sm:$0xff]
        %v202 = vld [vmem:[%s161 + $0x8] sm:$0xff]
        %v203 = vmul.f32 %v201, 30.0
        %v204 = vmul.f32 %v202, 30.0
        %v205 = vmax.f32 %v203, %v204
        %206 = vmax.xlane.f32.xlu0 %v205
        %v207 = vpop.xlane.xlu0 %206
        %v208 = vld [vmem:[#allocation2] sm:$0xff]
        %v209 = vmax.f32 %v208, %v207
        %v210 = vld [vmem:[#allocation3] sm:$0xff]
        %v211 = vsub.f32 %v208, %v209
        %v212 = vmul.f32 %v211, 1.442695
        %v213 = vpow.pop %v212
        %v214 = vmul.f32 %v210, %v213
        %216 = vset.pattern.permute.xlu0 0
        %217 = vperm.xlu0 %216, %v209
        %v218 = vpop.permute.xlu0 %217
        %v220 = vsub.f32 %v203, %v218
        %v221 = vsub.f32 %v204, %v218
        %v222 = vmul.f32 %v220, 1.442695
        %v223 = vpow.pop %v222
        %v224 = vmul.f32 %v221, 1.442695
        %v225 = vpow.pop %v224
        %v226 = vadd.f32 %v223, %v225
        %227 = vadd.xlane.f32.xlu0 %v226
        %v228 = vpop.xlane.xlu0 %227
        %v229 = vadd.f32 %v214, %v228
        %vm230 = vcmask 7168
        %231 = vst.msk [vmem:[#allocation3] sm:$0xff] %vm230, %v229
        %232 = vst.msk [vmem:[#allocation2] sm:$0xff] %vm230, %v209
        %p233 = scmp.eq.s32.totalorder %s21, 3
        // Predicated region
        $region37: #{tpu_custom_call.1} parent=27 // pred_check
          %p234 = pneg %p233
        $region38: #{tpu_custom_call.1} parent=27 // pred_check_branch
          %236 = sbr.rel (%p234) target = $region40
        $region39: #{tpu_custom_call.1} parent=27 // pred_region
          %v237 = vld [vmem:[%s189] sm:$0xff]
          %v238 = vld [vmem:[#allocation2] sm:$0xff]
          %v239 = vsub.f32 %v237, %v238
          %v240 = vmul.f32 %v239, 1.442695
          %v241 = vpow.pop %v240
          %v242 = vld [vmem:[#allocation3] sm:$0xff]
          %244 = vrot.lane.b32.xlu0 %v238, 1
          %v245 = vpop.permute.xlu0 %244
          %v247 = vsub.f32 %v237, %v245
          %v248 = vmul.f32 %v247, 1.442695
          %v249 = vpow.pop %v248
          %251 = vrot.lane.b32.xlu0 %v249, 127
          %v252 = vpop.permute.xlu0 %251
          %v254 = vsub.f32 %v241, %v252
          %v255 = vadd.f32 %v242, %v254
          %v256 = vmax.f32 %v255, %v241
          %v257 = vlog2.pop %v256
          %v258 = vmul.f32 %v257, 0.6931472
          %v259 = vadd.f32 %v238, %v258
          %v260 = vsub.f32 %v259, %v237
          %261 = vst.msk [vmem:[%s193] sm:$0xff] %vm230, %v260
        $region40: #{tpu_custom_call.1} parent=27 // pred_fallthru
          _
        %p262 = scmp.lt.s32.totalorder %s20, 1
        %s263 = scalar_select %p262, %s20, 1
        %s264 = smul.addr %s263, 8
        %s265 = scalar_lea.vmem %s2, %s264
        // Predicated region
        $region41: #{tpu_custom_call.1} parent=27 // pred_check
          %p266 = pneg %p100
        $region42: #{tpu_custom_call.1} parent=27 // pred_check_branch
          %268 = sbr.rel (%p266) target = $region44
        $region43: #{tpu_custom_call.1} parent=27 // pred_region
          _
        $region44: #{tpu_custom_call.1} parent=27 // pred_fallthru
          _
      $region28: #{tpu_custom_call.1} parent=5 // pred_fallthru
        _
      %p269 = scmp.le.s32.totalorder 2, %s11
      // Predicated region
      $region45: #{tpu_custom_call.1} parent=5 // pred_check
        %p270 = pneg %p269
      $region46: #{tpu_custom_call.1} parent=5 // pred_check_branch
        %272 = sbr.rel (%p270) target = $region48
      $region47: #{tpu_custom_call.1} parent=5 // pred_region
        %s273 = ssub.s32 %s11, 2
        // Predicated region
        $region49: #{tpu_custom_call.1} parent=47 // pred_check
          %p274 = pneg %p106
        $region50: #{tpu_custom_call.1} parent=47 // pred_check_branch
          %276 = sbr.rel (%p274) target = $region52
        $region51: #{tpu_custom_call.1} parent=47 // pred_region
          %p277 = scmp.lt.s32.totalorder %s22, 1
          %s278 = scalar_select %p277, %s22, 1
          %s279 = smul.addr %s278, 8
          %s280 = scalar_lea.vmem %s2, %s279
        $region52: #{tpu_custom_call.1} parent=47 // pred_fallthru
          _
      $region48: #{tpu_custom_call.1} parent=5 // pred_fallthru
        _
    $region6: #{tpu_custom_call.1} parent=1 // loop_footer
      %s15 = sadd.s32 1, %s11
    $region7: #{tpu_custom_call.1} parent=1 // loop_footer_branch
      %10 = sbr.rel target = $region3
    $region8: #{tpu_custom_call.1} parent=1 // loop_exit
      _
    %281 = vsyncpa [#allocation5], 1
    %s282 = scalar_lea.sflag [#allocation5], 1
    %283 = vsyncpa %s282, 1

</llo_original>
